<compile_context>
chip_gen: v6e
topology: v6e:2x2x1
jax: 0.10.0
libtpu: 0.0.40
codegen_flags: <defaults>
</compile_context>

<pallas_src>
import functools

import jax
import jax.numpy as jnp
from jax.experimental import pallas as pl
from jax.experimental.pallas import tpu as pltpu


def _round_up(x, m):
    return (x + m - 1) // m * m


def _encoder_rnn_kernel(n_layers, Hp,
                        tok_ref,                       # SMEM (seq_len,) int32 (scalar prefetch)
                        emb_ref,                       # (1, 1, Hp) bf16 — gathered embedding row
                        h0_ref,                        # (1, Hp)  f32 — initial hidden
                        wcat_ref,                      # (Hp, 6Hp) bf16 = [W_ih^T | W_hh^T]
                        ba_ref,                        # (1, 3Hp) f32: [b_ir+b_hr, b_iz+b_hz, b_in]
                        bhn_ref,                       # (1, Hp)  f32: b_hn
                        out_ref,                       # (1, 1, Hp) f32 — this step's output
                        h_scr):                        # VMEM (1, Hp) f32 — hidden carried across steps
    del tok_ref  # the gather already happened in the embedding BlockSpec index_map
    H3 = 3 * Hp
    t = pl.program_id(0)

    @pl.when(t == 0)
    def _():
        h_scr[...] = h0_ref[...]

    x = emb_ref[0]                                     # (1, Hp) bf16 embedded token
    h = h_scr[...]                                     # (1, Hp) f32 hidden
    bias_a = ba_ref[...]                               # (1, 3Hp)
    bias_hn = bhn_ref[...]                             # (1, Hp)

    def gru_update(gx, gh, h_prev):
        # PyTorch GRU gate order [r, z, n]; b_hn applied inside r * (...).
        r = jax.nn.sigmoid(gx[:, 0:Hp] + gh[:, 0:Hp])
        z = jax.nn.sigmoid(gx[:, Hp:2 * Hp] + gh[:, Hp:2 * Hp])
        n = jnp.tanh(gx[:, 2 * Hp:H3] + r * (gh[:, 2 * Hp:H3] + bias_hn))
        return (1.0 - z) * n + z * h_prev

    # Layer 0: stack [x; h] so one MXU pass produces both gate pre-activations.
    lhs = jnp.concatenate([x, h.astype(jnp.bfloat16)], axis=0)          # (2, Hp) bf16
    g = jnp.dot(lhs, wcat_ref[...], preferred_element_type=jnp.float32)  # (2, 6Hp) f32
    h = gru_update(g[0:1, 0:H3] + bias_a, g[1:2, H3:], h)

    # Layers 1..n-1: inner GRU call has seq_len == 1 so output == hidden -> x == h
    # -> one fused matmul against the same resident RHS.
    for _ in range(n_layers - 1):
        g = jnp.dot(h.astype(jnp.bfloat16), wcat_ref[...],
                    preferred_element_type=jnp.float32)                 # (1, 6Hp)
        h = gru_update(g[:, :H3] + bias_a, g[:, H3:], h)

    h_scr[...] = h
    out_ref[0] = h


def prepare_kernel_params(params):
    """Repack PyTorch-layout f32 params into the lane-dense bf16 kernel layout."""
    emb = params["embedding"]                          # (V, H) f32
    w_ih = params["w_ih"]                              # (3H, H) f32, gate-major [r, z, n]
    w_hh = params["w_hh"]                              # (3H, H) f32
    b_ih = params["b_ih"]                              # (3H,)
    b_hh = params["b_hh"]                              # (3H,)
    V, H = emb.shape
    Hp = _round_up(H, 128)

    # Embedding: pad lanes to Hp, add a unit axis so the per-token gather block is (1, 1, Hp).
    emb_p = jnp.zeros((V, Hp), jnp.float32).at[:, :H].set(emb)
    emb3d = emb_p.reshape(V, 1, Hp).astype(jnp.bfloat16)

    def pad_gates(w):                                  # (3H, H) -> (Hp, 3Hp), transposed per gate
        out = jnp.zeros((Hp, 3 * Hp), jnp.float32)
        for g in range(3):
            wg = w[g * H:(g + 1) * H, :]               # (H, H)
            out = out.at[:H, g * Hp:g * Hp + H].set(wg.T)
        return out

    wcat = jnp.concatenate([pad_gates(w_ih), pad_gates(w_hh)],
                           axis=1).astype(jnp.bfloat16)          # (Hp, 6Hp)

    bias_a = jnp.zeros((1, 3 * Hp), jnp.float32)
    bias_a = bias_a.at[0, 0:H].set(b_ih[0:H] + b_hh[0:H])                    # r
    bias_a = bias_a.at[0, Hp:Hp + H].set(b_ih[H:2 * H] + b_hh[H:2 * H])      # z
    bias_a = bias_a.at[0, 2 * Hp:2 * Hp + H].set(b_ih[2 * H:3 * H])          # n (input half)
    bias_hn = jnp.zeros((1, Hp), jnp.float32).at[0, 0:H].set(b_hh[2 * H:3 * H])

    return dict(emb3d=emb3d, wcat=wcat, bias_a=bias_a, bias_hn=bias_hn,
                V=V, H=H, Hp=Hp)


def _vmem_limit_bytes(Hp):
    """Scoped-VMEM budget derived from the actual buffer sizes (v7x: stay under 64 MiB)."""
    bf16, f32 = 2, 4
    wcat = Hp * 6 * Hp * bf16                          # resident weight panel
    per_step = Hp * bf16 + Hp * f32                    # emb block + out block
    consts = (3 * Hp + Hp + Hp) * f32                  # bias_a + bias_hn + h0
    scratch = Hp * f32
    total = 2 * (wcat + per_step + consts) + scratch + (2 << 20)   # 2x for double-buffering + slack
    return int(min(max(total, 8 << 20), 64 << 20))


def pad_hidden(hidden, kparams):
    """(1, 1, H) (or anything reshapeable to (1, H)) -> padded (1, Hp) f32 kernel layout."""
    H, Hp = kparams["H"], kparams["Hp"]
    h = jnp.asarray(hidden, jnp.float32).reshape(1, H)
    return jnp.zeros((1, Hp), jnp.float32).at[:, :H].set(h)


def encoder_rnn_forward_seq(tokens, hidden_p, kparams, *, n_layers=1):
    """Run the module's forward once per token of `tokens` inside one pallas_call.

    tokens:   (seq_len,) int token ids.
    hidden_p: (1, Hp) f32 padded hidden state (from pad_hidden / a previous call).
    Returns (outputs_p, hidden_p_new): (seq_len, 1, Hp) f32 per-step outputs and the
    final (1, Hp) padded hidden state. Slice [..., :H] to recover the PyTorch layout.
    """
    V, Hp = kparams["V"], kparams["Hp"]
    tokens = jnp.asarray(tokens, jnp.int32).reshape(-1)
    seq_len = tokens.shape[0]
    tok = jnp.clip(tokens, 0, V - 1)

    kernel = functools.partial(_encoder_rnn_kernel, n_layers, Hp)

    out_p = pl.pallas_call(
        kernel,
        out_shape=jax.ShapeDtypeStruct((seq_len, 1, Hp), jnp.float32),
        grid_spec=pltpu.PrefetchScalarGridSpec(
            num_scalar_prefetch=1,
            grid=(seq_len,),
            in_specs=[
                # Gather only the needed embedding row via the prefetched token ids.
                pl.BlockSpec((1, 1, Hp), lambda t, tok: (tok[t], 0, 0)),
                # Constant index_maps -> DMA'd once, stay VMEM-resident for the sequence.
                pl.BlockSpec((1, Hp), lambda t, tok: (0, 0)),             # h0
                pl.BlockSpec((Hp, 6 * Hp), lambda t, tok: (0, 0)),        # [W_ih^T | W_hh^T] bf16
                pl.BlockSpec((1, 3 * Hp), lambda t, tok: (0, 0)),         # pre-summed r/z/n biases
                pl.BlockSpec((1, Hp), lambda t, tok: (0, 0)),             # b_hn
            ],
            out_specs=pl.BlockSpec((1, 1, Hp), lambda t, tok: (t, 0, 0)),
            scratch_shapes=[pltpu.VMEM((1, Hp), jnp.float32)],            # carried hidden state
        ),
        compiler_params=pltpu.CompilerParams(
            # The token axis is a true recurrence (hidden carried in scratch) -> arbitrary.
            # A batch/independent-sequence axis (if added) should be "parallel" for v7x's 2 TCs.
            dimension_semantics=("arbitrary",),
            vmem_limit_bytes=_vmem_limit_bytes(Hp)),
    )(tok, kparams["emb3d"], hidden_p, kparams["wcat"], kparams["bias_a"], kparams["bias_hn"])

    h_p = out_p[-1]                      # (1, Hp): last step's last-layer hidden == final hidden
    return out_p, h_p


def encoder_rnn_forward(token, hidden_p, kparams, *, n_layers=1):
    """Single-token module forward (seq_len == 1). Works on padded (1, Hp) hidden state."""
    out_p, h_p = encoder_rnn_forward_seq(jnp.asarray(token, jnp.int32).reshape(1),
                                         hidden_p, kparams, n_layers=n_layers)
    return out_p[0], h_p                 # both (1, Hp) padded


def init_params(key, input_size, hidden_size):
    """Deterministic synthetic parameters matching nn.Embedding + nn.GRU(h, h) shapes."""
    k1, k2, k3, k4, k5 = jax.random.split(key, 5)
    bound = 1.0 / float(hidden_size) ** 0.5
    emb = jax.random.normal(k1, (input_size, hidden_size), jnp.float32)
    w_ih = jax.random.uniform(k2, (3 * hidden_size, hidden_size), jnp.float32, -bound, bound)
    w_hh = jax.random.uniform(k3, (3 * hidden_size, hidden_size), jnp.float32, -bound, bound)
    b_ih = jax.random.uniform(k4, (3 * hidden_size,), jnp.float32, -bound, bound)
    b_hh = jax.random.uniform(k5, (3 * hidden_size,), jnp.float32, -bound, bound)
    return dict(embedding=emb, w_ih=w_ih, w_hh=w_hh, b_ih=b_ih, b_hh=b_hh)


def _reference_forward_seq(tokens, hidden, params, *, n_layers=1):
    """Pure-JAX reference: the PyTorch forward applied token-by-token, with the same
    bf16 weight quantization the kernel uses."""
    H = params["embedding"].shape[1]
    q = lambda a: a.astype(jnp.bfloat16).astype(jnp.float32)
    emb = q(params["embedding"])
    wih_t = q(params["w_ih"].T)
    whh_t = q(params["w_hh"].T)
    b_ih = params["b_ih"].reshape(1, -1)
    b_hh = params["b_hh"].reshape(1, -1)
    h = jnp.asarray(hidden, jnp.float32).reshape(1, H)
    outs = []
    for t in tokens:
        x = emb[int(t)].reshape(1, H)
        for _ in range(n_layers):
            gx = q(x) @ wih_t + b_ih
            gh = q(h) @ whh_t + b_hh
            r = jax.nn.sigmoid(gx[:, 0:H] + gh[:, 0:H])
            z = jax.nn.sigmoid(gx[:, H:2 * H] + gh[:, H:2 * H])
            n = jnp.tanh(gx[:, 2 * H:3 * H] + r * gh[:, 2 * H:3 * H])
            h = (1.0 - z) * n + z * h
            x = h
        outs.append(h)
    return jnp.stack(outs, axis=0), h        # (seq_len, 1, H), (1, H)


if __name__ == "__main__":
    input_size = 16      # vocab size
    hidden_size = 32
    seq_len = 8

    key = jax.random.PRNGKey(0)
    params = init_params(key, input_size, hidden_size)
    kparams = prepare_kernel_params(params)

    tokens = jax.random.randint(jax.random.PRNGKey(1), (seq_len,), 0, input_size, jnp.int32)
    hidden0 = jnp.zeros((1, 1, hidden_size), jnp.float32)     # init_hidden()

    # Full-sequence path (weights resident in VMEM across all tokens), n_layers = 1 and 2.
    for n_layers in (1, 2):
        h_p = pad_hidden(hidden0, kparams)
        out_p, h_p = encoder_rnn_forward_seq(tokens, h_p, kparams, n_layers=n_layers)
        out_p = jax.block_until_ready(out_p)
        h_p = jax.block_until_ready(h_p)

        outs = out_p[..., :hidden_size]                              # (seq_len, 1, H)
        h_out = h_p[:, :hidden_size].reshape(1, 1, hidden_size)

        ref_outs, ref_h = _reference_forward_seq([int(t) for t in tokens], hidden0, params,
                                                 n_layers=n_layers)
        assert outs.shape == (seq_len, 1, hidden_size)
        assert jnp.allclose(outs, ref_outs, atol=2e-4), f"seq output mismatch (n_layers={n_layers})"
        assert jnp.allclose(h_out, ref_h.reshape(1, 1, hidden_size), atol=2e-4), \
            f"seq hidden mismatch (n_layers={n_layers})"

    # Single-token path (the module's exact forward signature: one token, one hidden).
    token = jnp.int32(3)
    h_p = pad_hidden(hidden0, kparams)
    out1_p, h1_p = encoder_rnn_forward(token, h_p, kparams, n_layers=1)
    out1_p = jax.block_until_ready(out1_p)
    out1 = out1_p[:, :hidden_size].reshape(1, 1, hidden_size)
    h1 = h1_p[:, :hidden_size].reshape(1, 1, hidden_size)
    ref_o1, ref_h1 = _reference_forward_seq([int(token)], hidden0, params, n_layers=1)
    assert jnp.allclose(out1, ref_o1[0].reshape(1, 1, hidden_size), atol=2e-4), "single-token output mismatch"
    assert jnp.allclose(h1, ref_h1.reshape(1, 1, hidden_size), atol=2e-4), "single-token hidden mismatch"

    print("KERNEL_OK")
</pallas_src>

<mosaic_0001>
module attributes {stable_mosaic.version = 11 : i64} {
  func.func @_encoder_rnn_kernel(%arg0: i32, %arg1: memref<8xi32, #tpu.memory_space<smem>>, %arg2: memref<1x1x128xbf16, #tpu.memory_space<vmem>>, %arg3: memref<1x128xf32, #tpu.memory_space<vmem>>, %arg4: memref<128x768xbf16, #tpu.memory_space<vmem>>, %arg5: memref<1x384xf32, #tpu.memory_space<vmem>>, %arg6: memref<1x128xf32, #tpu.memory_space<vmem>>, %arg7: memref<1x1x128xf32, #tpu.memory_space<vmem>>, %arg8: memref<1x128xf32, #tpu.memory_space<vmem>>) attributes {dimension_semantics = [#tpu.dimension_semantics<arbitrary>], iteration_bounds = array<i64: 8>, scalar_prefetch = 1 : i64, scratch_operands = 1 : i64, tpu.core_type = #tpu.core_type<tc>, window_params = [{transform_indices = @transform_0, window_bounds = array<i64: 1, 1, 128>}, {pipeline_mode = #tpu.pipeline_mode<synchronous>, transform_indices = @transform_1, window_bounds = array<i64: 1, 128>}, {pipeline_mode = #tpu.pipeline_mode<synchronous>, transform_indices = @transform_2, window_bounds = array<i64: 128, 768>}, {pipeline_mode = #tpu.pipeline_mode<synchronous>, transform_indices = @transform_3, window_bounds = array<i64: 1, 384>}, {pipeline_mode = #tpu.pipeline_mode<synchronous>, transform_indices = @transform_4, window_bounds = array<i64: 1, 128>}, {transform_indices = @transform_5, window_bounds = array<i64: 1, 1, 128>}]} {
    %c0_i32 = arith.constant 0 : i32
    %0 = arith.cmpi eq, %arg0, %c0_i32 : i32
    %1 = arith.extui %0 : i1 to i32
    %c0_i32_0 = arith.constant 0 : i32
    %2 = arith.cmpi ne, %1, %c0_i32_0 : i32
    scf.if %2 {
      %c0_19 = arith.constant 0 : index
      %c0_20 = arith.constant 0 : index
      %46 = vector.load %arg3[%c0_19, %c0_20] : memref<1x128xf32, #tpu.memory_space<vmem>>, vector<1x128xf32>
      %c0_21 = arith.constant 0 : index
      %c0_22 = arith.constant 0 : index
      %47 = vector.load %arg8[%c0_21, %c0_22] : memref<1x128xf32, #tpu.memory_space<vmem>>, vector<1x128xf32>
      tpu.vector_store %arg8[%c0_21, %c0_22], %46 {strides = array<i32>} : memref<1x128xf32, #tpu.memory_space<vmem>>, vector<1x128xf32>,
    } else {
    }
    %c0 = arith.constant 0 : index
    %c0_1 = arith.constant 0 : index
    %c0_2 = arith.constant 0 : index
    %3 = vector.load %arg2[%c0, %c0_1, %c0_2] : memref<1x1x128xbf16, #tpu.memory_space<vmem>>, vector<1x1x128xbf16>
    %4 = vector.shape_cast %3 : vector<1x1x128xbf16> to vector<1x128xbf16>
    %c0_3 = arith.constant 0 : index
    %c0_4 = arith.constant 0 : index
    %5 = vector.load %arg8[%c0_3, %c0_4] : memref<1x128xf32, #tpu.memory_space<vmem>>, vector<1x128xf32>
    %c0_5 = arith.constant 0 : index
    %c0_6 = arith.constant 0 : index
    %6 = vector.load %arg5[%c0_5, %c0_6] : memref<1x384xf32, #tpu.memory_space<vmem>>, vector<1x384xf32>
    %c0_7 = arith.constant 0 : index
    %c0_8 = arith.constant 0 : index
    %7 = vector.load %arg6[%c0_7, %c0_8] : memref<1x128xf32, #tpu.memory_space<vmem>>, vector<1x128xf32>
    %8 = arith.truncf %5 : vector<1x128xf32> to vector<1x128xbf16>
    %9 = tpu.concatenate %4, %8 in 0 : vector<1x128xbf16>, vector<1x128xbf16> -> vector<2x128xbf16>
    %c0_9 = arith.constant 0 : index
    %c0_10 = arith.constant 0 : index
    %10 = vector.load %arg4[%c0_9, %c0_10] : memref<128x768xbf16, #tpu.memory_space<vmem>>, vector<128x768xbf16>
    %cst = arith.constant dense<0.000000e+00> : vector<2x768xf32>
    %11 = tpu.matmul %9, %10, %cst {dimension_numbers = #tpu.dot_dimension_numbers<[1], [0], [0], [1], [0, 0, 1, 1], [], []>} : vector<2x128xbf16>, vector<128x768xbf16>, vector<2x768xf32> -> vector<2x768xf32>
    %12 = vector.extract_strided_slice %11 {offsets = [0, 0], sizes = [1, 384], strides = [1, 1]} : vector<2x768xf32> to vector<1x384xf32>
    %13 = arith.addf %12, %6 : vector<1x384xf32>
    %14 = vector.extract_strided_slice %11 {offsets = [1, 384], sizes = [1, 384], strides = [1, 1]} : vector<2x768xf32> to vector<1x384xf32>
    %15 = vector.extract_strided_slice %13 {offsets = [0, 0], sizes = [1, 128], strides = [1, 1]} : vector<1x384xf32> to vector<1x128xf32>
    %16 = vector.extract_strided_slice %14 {offsets = [0, 0], sizes = [1, 128], strides = [1, 1]} : vector<1x384xf32> to vector<1x128xf32>
    %17 = arith.addf %15, %16 : vector<1x128xf32>
    %18 = arith.negf %17 : vector<1x128xf32>
    %19 = math.exp %18 : vector<1x128xf32>
    %cst_11 = arith.constant 1.000000e+00 : f32
    %20 = vector.broadcast %cst_11 : f32 to vector<1x128xf32>
    %21 = arith.addf %20, %19 : vector<1x128xf32>
    %22 = arith.divf %20, %21 : vector<1x128xf32>
    %23 = vector.extract_strided_slice %13 {offsets = [0, 128], sizes = [1, 128], strides = [1, 1]} : vector<1x384xf32> to vector<1x128xf32>
    %24 = vector.extract_strided_slice %14 {offsets = [0, 128], sizes = [1, 128], strides = [1, 1]} : vector<1x384xf32> to vector<1x128xf32>
    %25 = arith.addf %23, %24 : vector<1x128xf32>
    %26 = arith.negf %25 : vector<1x128xf32>
    %27 = math.exp %26 : vector<1x128xf32>
    %cst_12 = arith.constant 1.000000e+00 : f32
    %28 = vector.broadcast %cst_12 : f32 to vector<1x128xf32>
    %29 = arith.addf %28, %27 : vector<1x128xf32>
    %30 = arith.divf %28, %29 : vector<1x128xf32>
    %31 = vector.extract_strided_slice %13 {offsets = [0, 256], sizes = [1, 128], strides = [1, 1]} : vector<1x384xf32> to vector<1x128xf32>
    %32 = vector.extract_strided_slice %14 {offsets = [0, 256], sizes = [1, 128], strides = [1, 1]} : vector<1x384xf32> to vector<1x128xf32>
    %33 = arith.addf %32, %7 : vector<1x128xf32>
    %34 = arith.mulf %22, %33 : vector<1x128xf32>
    %35 = arith.addf %31, %34 : vector<1x128xf32>
    %36 = math.tanh %35 : vector<1x128xf32>
    %cst_13 = arith.constant 1.000000e+00 : f32
    %37 = vector.broadcast %cst_13 : f32 to vector<1x128xf32>
    %38 = arith.subf %37, %30 : vector<1x128xf32>
    %39 = arith.mulf %38, %36 : vector<1x128xf32>
    %40 = arith.mulf %30, %5 : vector<1x128xf32>
    %41 = arith.addf %39, %40 : vector<1x128xf32>
    %c0_14 = arith.constant 0 : index
    %c0_15 = arith.constant 0 : index
    %42 = vector.load %arg8[%c0_14, %c0_15] : memref<1x128xf32, #tpu.memory_space<vmem>>, vector<1x128xf32>
    tpu.vector_store %arg8[%c0_14, %c0_15], %41 {strides = array<i32>} : memref<1x128xf32, #tpu.memory_space<vmem>>, vector<1x128xf32>,
    %c0_16 = arith.constant 0 : index
    %c0_17 = arith.constant 0 : index
    %c0_18 = arith.constant 0 : index
    %43 = vector.load %arg7[%c0_16, %c0_17, %c0_18] : memref<1x1x128xf32, #tpu.memory_space<vmem>>, vector<1x1x128xf32>
    %44 = vector.shape_cast %43 : vector<1x1x128xf32> to vector<1x128xf32>
    %45 = vector.shape_cast %41 : vector<1x128xf32> to vector<1x1x128xf32>
    tpu.vector_store %arg7[%c0_16, %c0_17, %c0_18], %45 {strides = array<i32>} : memref<1x1x128xf32, #tpu.memory_space<vmem>>, vector<1x1x128xf32>,
    return
  }
  func.func @transform_0(%arg0: i32, %arg1: memref<8xi32, #tpu.memory_space<smem>>) -> (i32, i32, i32) {
    %0 = arith.index_cast %arg0 : i32 to index
    %1 = memref.load %arg1[%0] : memref<8xi32, #tpu.memory_space<smem>>
    %c0_i32 = arith.constant 0 : i32
    %c0_i32_0 = arith.constant 0 : i32
    %c0_i32_1 = arith.constant 0 : i32
    return %1, %c0_i32, %c0_i32_0 : i32, i32, i32
  }
  func.func @transform_1(%arg0: i32, %arg1: memref<8xi32, #tpu.memory_space<smem>>) -> (i32, i32) {
    %c0_i32 = arith.constant 0 : i32
    %c0_i32_0 = arith.constant 0 : i32
    %c0_i32_1 = arith.constant 0 : i32
    return %c0_i32, %c0_i32_0 : i32, i32
  }
  func.func @transform_2(%arg0: i32, %arg1: memref<8xi32, #tpu.memory_space<smem>>) -> (i32, i32) {
    %c0_i32 = arith.constant 0 : i32
    %c0_i32_0 = arith.constant 0 : i32
    %c0_i32_1 = arith.constant 0 : i32
    return %c0_i32, %c0_i32_0 : i32, i32
  }
  func.func @transform_3(%arg0: i32, %arg1: memref<8xi32, #tpu.memory_space<smem>>) -> (i32, i32) {
    %c0_i32 = arith.constant 0 : i32
    %c0_i32_0 = arith.constant 0 : i32
    %c0_i32_1 = arith.constant 0 : i32
    return %c0_i32, %c0_i32_0 : i32, i32
  }
  func.func @transform_4(%arg0: i32, %arg1: memref<8xi32, #tpu.memory_space<smem>>) -> (i32, i32) {
    %c0_i32 = arith.constant 0 : i32
    %c0_i32_0 = arith.constant 0 : i32
    %c0_i32_1 = arith.constant 0 : i32
    return %c0_i32, %c0_i32_0 : i32, i32
  }
  func.func @transform_5(%arg0: i32, %arg1: memref<8xi32, #tpu.memory_space<smem>>) -> (i32, i32, i32) {
    %c0_i32 = arith.constant 0 : i32
    %c0_i32_0 = arith.constant 0 : i32
    %c0_i32_1 = arith.constant 0 : i32
    return %arg0, %c0_i32, %c0_i32_0 : i32, i32, i32
  }
}

</mosaic_0001>

<llo_original>
// kernel: tpu_custom_call.1
$region0: #{tpu_custom_call.1}
  #allocation0 [shape = 'u32[]', space=smem, size = 0x4, offset = 0x4, fixed_abs, tag = 'smem constant byte address 0x4 - core index']
  #allocation1 [shape = 'u32[144,128]{1,0:T(1,128)}', space=vmem, size = 0x12000, scoped, tag = 'internal scratch']
  #allocation2 [shape = 'f32[1,128]{1,0:T(1,128)}', space=vmem, size = 0x200, scoped, tag = 'scratch operand']
  #allocation3 [shape = 's32[1]{0}', space=sflag, size = 0x4, scoped, tag = 'scoped memory for tpu_custom_call.1']
  #allocation4 [shape = 'u8[512]{0}', space=smem, size = 0x200, scoped, tag = 'prefetched SMEM operand 0']
  %s0 = inlined_call_operand.vmem [shape: s32[8], index: 0, kind: input, shape index: {}]
  %s1 = inlined_call_operand.vmem [shape: bf16[16,1,128], index: 1, kind: input, shape index: {}]
  %s2 = inlined_call_operand.vmem [shape: f32[1,128], index: 2, kind: input, shape index: {}]
  %s3 = inlined_call_operand.hbm [shape: bf16[128,768], index: 3, kind: input, shape index: {}]
  %s4 = inlined_call_operand.vmem [shape: f32[1,384], index: 4, kind: input, shape index: {}]
  %s5 = inlined_call_operand.vmem [shape: f32[1,128], index: 5, kind: input, shape index: {}]
  %s6 = inlined_call_operand.hbm [shape: f32[8,1,128], index: 6, kind: output, shape index: {}]
  %s7 = sld [smem:[#allocation0]]
  $region61: #{tpu_custom_call.1} parent=0
    _
  %s9 = ssub.s32 1, %s7
  %s10 = scalar_select 0, %s9, %s7
  %s11 = sshll.u32 %s0, 4
  %s12 = int_to_ptr.vmem [resolvable:$true] %s11
  %14 = dma.vmem_to_smem %s12, 16, [#allocation4], [#allocation3]
  %15 = dma.done [#allocation3], 16
  %16 = sfence
  $region1: #{tpu_custom_call.1} parent=0
    #allocation5 [shape = 'u8[196608]{0}', space=vmem, size = 0x30000, scoped, tag = 'input window, operand 3, single buffered']
    #allocation6 [shape = 's32[2]{0}', space=sflag, size = 0x8, scoped, tag = 'scoped memory for tpu_custom_call.1']
    #allocation7 [shape = 's32[2]{0}', space=sflag, size = 0x8, scoped, tag = 'scoped memory for tpu_custom_call.1']
    #allocation8 [shape = 'u8[1024]{0}', space=vmem, size = 0x400, scoped, tag = 'output window, operand 0']
    %17 = vsyncpa [#allocation6], 0
    %18 = vsyncpa [#allocation7], 0
    %s19 = scalar_lea.sflag [#allocation7], 1
    %20 = vsyncpa %s19, 0
    loop: start=0, step=1, limit=10
    $region2: #{tpu_custom_call.1} parent=1 // loop_pre_header
      _
    $region3: #{tpu_custom_call.1} parent=1 // loop_header
      %s22 = sphi 0, %s26
      %p23 = scmp.ge.s32.totalorder %s22, 10
      %s34 = sphi 0, %s36
      %s37 = sphi 0, %s34
      %s38 = sphi 0, %s37
      %s54 = sphi 0, %s38
      %s58 = sphi 0, %s58
      %s60 = sphi 0, %s58
      %s61 = sphi 0, %s60
      %s75 = sphi 0, %s61
      %s79 = sphi 0, %s79
      %s81 = sphi 0, %s79
      %s82 = sphi 0, %s81
      %s96 = sphi 0, %s82
      %s100 = sphi 0, %s100
      %s102 = sphi 0, %s100
      %s103 = sphi 0, %s102
      %s117 = sphi 0, %s103
      %s121 = sphi 0, %s121
      %s123 = sphi 0, %s121
      %s124 = sphi 0, %s123
      %s138 = sphi 0, %s124
      %s144 = sphi 0, %s146
      %s147 = sphi 0, %s144
      %s148 = sphi 0, %s147
      %s164 = sphi 0, %s148
    $region4: #{tpu_custom_call.1} parent=1 // loop_header_branch
      %25 = sbr.rel (%p23) target = $region8
    $region5: #{tpu_custom_call.1} parent=1 // loop_body
      %s27 = ssub.s32 %s22, 1
      %s28 = ssub.s32 %s22, 2
      %s29 = sadd.s32 %s22, 1
      %s30 = sld [smem:[#allocation4 + %s22]]
      %s31 = sld [smem:[#allocation4 + %s29]]
      %s32 = ssub.s32 %s30, %s31
      %p33 = scmp.eq.s32.totalorder %s32, 0
      %s35 = sadd.s32 %s34, 1
      %s36 = scalar_select %p33, %s34, %s35
      %p39 = pneg %p33
      %p40 = scmp.eq.s32.totalorder %s22, 7
      %p41 = por %p39, %p40
      %p42 = scmp.ne.s32.totalorder %s34, %s37
      %p43 = scmp.eq.s32.totalorder %s22, 0
      %p44 = por %p42, %p43
      %p45 = scmp.ne.s32.totalorder %s34, %s37
      %p46 = scmp.eq.s32.totalorder %s27, 7
      %p47 = por %p45, %p46
      %p48 = scmp.ne.s32.totalorder %s37, %s38
      %p49 = scmp.eq.s32.totalorder %s27, 0
      %p50 = por %p48, %p49
      %p51 = scmp.ne.s32.totalorder %s37, %s38
      %p52 = scmp.eq.s32.totalorder %s28, 7
      %p53 = por %p51, %p52
      %p55 = scmp.ne.s32.totalorder %s38, %s54
      %p56 = scmp.eq.s32.totalorder %s28, 0
      %p57 = por %p55, %p56
      %s59 = sadd.s32 %s58, 1
      %p62 = scmp.eq.s32.totalorder %s22, 7
      %p63 = scmp.ne.s32.totalorder %s58, %s60
      %p64 = scmp.eq.s32.totalorder %s22, 0
      %p65 = por %p63, %p64
      %p66 = scmp.ne.s32.totalorder %s58, %s60
      %p67 = scmp.eq.s32.totalorder %s27, 7
      %p68 = por %p66, %p67
      %p69 = scmp.ne.s32.totalorder %s60, %s61
      %p70 = scmp.eq.s32.totalorder %s27, 0
      %p71 = por %p69, %p70
      %p72 = scmp.ne.s32.totalorder %s60, %s61
      %p73 = scmp.eq.s32.totalorder %s28, 7
      %p74 = por %p72, %p73
      %p76 = scmp.ne.s32.totalorder %s61, %s75
      %p77 = scmp.eq.s32.totalorder %s28, 0
      %p78 = por %p76, %p77
      %s80 = sadd.s32 %s79, 1
      %p83 = scmp.eq.s32.totalorder %s22, 7
      %p84 = scmp.ne.s32.totalorder %s79, %s81
      %p85 = scmp.eq.s32.totalorder %s22, 0
      %p86 = por %p84, %p85
      %p87 = scmp.ne.s32.totalorder %s79, %s81
      %p88 = scmp.eq.s32.totalorder %s27, 7
      %p89 = por %p87, %p88
      %p90 = scmp.ne.s32.totalorder %s81, %s82
      %p91 = scmp.eq.s32.totalorder %s27, 0
      %p92 = por %p90, %p91
      %p93 = scmp.ne.s32.totalorder %s81, %s82
      %p94 = scmp.eq.s32.totalorder %s28, 7
      %p95 = por %p93, %p94
      %p97 = scmp.ne.s32.totalorder %s82, %s96
      %p98 = scmp.eq.s32.totalorder %s28, 0
      %p99 = por %p97, %p98
      %s101 = sadd.s32 %s100, 1
      %p104 = scmp.eq.s32.totalorder %s22, 7
      %p105 = scmp.ne.s32.totalorder %s100, %s102
      %p106 = scmp.eq.s32.totalorder %s22, 0
      %p107 = por %p105, %p106
      %p108 = scmp.ne.s32.totalorder %s100, %s102
      %p109 = scmp.eq.s32.totalorder %s27, 7
      %p110 = por %p108, %p109
      %p111 = scmp.ne.s32.totalorder %s102, %s103
      %p112 = scmp.eq.s32.totalorder %s27, 0
      %p113 = por %p111, %p112
      %p114 = scmp.ne.s32.totalorder %s102, %s103
      %p115 = scmp.eq.s32.totalorder %s28, 7
      %p116 = por %p114, %p115
      %p118 = scmp.ne.s32.totalorder %s103, %s117
      %p119 = scmp.eq.s32.totalorder %s28, 0
      %p120 = por %p118, %p119
      %s122 = sadd.s32 %s121, 1
      %p125 = scmp.eq.s32.totalorder %s22, 7
      %p126 = scmp.ne.s32.totalorder %s121, %s123
      %p127 = scmp.eq.s32.totalorder %s22, 0
      %p128 = por %p126, %p127
      %p129 = scmp.ne.s32.totalorder %s121, %s123
      %p130 = scmp.eq.s32.totalorder %s27, 7
      %p131 = por %p129, %p130
      %p132 = scmp.ne.s32.totalorder %s123, %s124
      %p133 = scmp.eq.s32.totalorder %s27, 0
      %p134 = por %p132, %p133
      %p135 = scmp.ne.s32.totalorder %s123, %s124
      %p136 = scmp.eq.s32.totalorder %s28, 7
      %p137 = por %p135, %p136
      %p139 = scmp.ne.s32.totalorder %s124, %s138
      %p140 = scmp.eq.s32.totalorder %s28, 0
      %p141 = por %p139, %p140
      %s142 = ssub.s32 %s22, %s29
      %p143 = scmp.eq.s32.totalorder %s142, 0
      %s145 = sadd.s32 %s144, 1
      %s146 = scalar_select %p143, %s144, %s145
      %p149 = pneg %p143
      %p150 = scmp.eq.s32.totalorder %s22, 7
      %p151 = por %p149, %p150
      %p152 = scmp.ne.s32.totalorder %s144, %s147
      %p153 = scmp.eq.s32.totalorder %s22, 0
      %p154 = por %p152, %p153
      %p155 = scmp.ne.s32.totalorder %s144, %s147
      %p156 = scmp.eq.s32.totalorder %s27, 7
      %p157 = por %p155, %p156
      %p158 = scmp.ne.s32.totalorder %s147, %s148
      %p159 = scmp.eq.s32.totalorder %s27, 0
      %p160 = por %p158, %p159
      %p161 = scmp.ne.s32.totalorder %s147, %s148
      %p162 = scmp.eq.s32.totalorder %s28, 7
      %p163 = por %p161, %p162
      %p165 = scmp.ne.s32.totalorder %s148, %s164
      %p166 = scmp.eq.s32.totalorder %s28, 0
      %p167 = por %p165, %p166
      %p168 = scmp.le.s32.totalorder 1, %s22
      %p169 = scmp.lt.s32.totalorder %s22, 9
      %p170 = pnand %p168, %p169
      %p171 = pneg %p170
      // Predicated region
      $region9: #{tpu_custom_call.1} parent=5 // pred_check
        _
      $region10: #{tpu_custom_call.1} parent=5 // pred_check_branch
        %173 = sbr.rel (%p170) target = $region12
      $region11: #{tpu_custom_call.1} parent=5 // pred_region
        %s174 = ssub.s32 %s22, 1
        // Predicated region
        $region13: #{tpu_custom_call.1} parent=11 // pred_check
          %p175 = pneg %p71
        $region14: #{tpu_custom_call.1} parent=11 // pred_check_branch
          %177 = sbr.rel (%p175) target = $region16
        $region15: #{tpu_custom_call.1} parent=11 // pred_region
          _
        $region16: #{tpu_custom_call.1} parent=11 // pred_fallthru
          _
        // Predicated region
        $region17: #{tpu_custom_call.1} parent=11 // pred_check
          %p178 = pneg %p92
        $region18: #{tpu_custom_call.1} parent=11 // pred_check_branch
          %180 = sbr.rel (%p178) target = $region20
        $region19: #{tpu_custom_call.1} parent=11 // pred_region
          %s182 = ssub.s32 6144, 6144
          %183 = vsyncadd [#allocation6], %s182
          %s184 = sshll.u32 [#allocation5], 4
          %s185 = int_to_ptr.vmem [resolvable:$true] %s184
          %190 = dma.hbm_to_vmem [thread:$0]  %s3, 6144, %s185, [#allocation6], 384, 384, 24
        $region20: #{tpu_custom_call.1} parent=11 // pred_fallthru
          _
        // Predicated region
        $region21: #{tpu_custom_call.1} parent=11 // pred_check
          %p191 = pneg %p113
        $region22: #{tpu_custom_call.1} parent=11 // pred_check_branch
          %193 = sbr.rel (%p191) target = $region24
        $region23: #{tpu_custom_call.1} parent=11 // pred_region
          _
        $region24: #{tpu_custom_call.1} parent=11 // pred_fallthru
          _
        // Predicated region
        $region25: #{tpu_custom_call.1} parent=11 // pred_check
          %p194 = pneg %p134
        $region26: #{tpu_custom_call.1} parent=11 // pred_check_branch
          %196 = sbr.rel (%p194) target = $region28
        $region27: #{tpu_custom_call.1} parent=11 // pred_region
          _
        $region28: #{tpu_custom_call.1} parent=11 // pred_fallthru
          _
      $region12: #{tpu_custom_call.1} parent=5 // pred_fallthru
        _
      %p197 = scmp.lt.s32.totalorder %s22, 8
      // Predicated region
      $region29: #{tpu_custom_call.1} parent=5 // pred_check
        %p198 = pneg %p197
      $region30: #{tpu_custom_call.1} parent=5 // pred_check_branch
        %200 = sbr.rel (%p198) target = $region32
      $region31: #{tpu_custom_call.1} parent=5 // pred_region
        // Predicated region
        $region33: #{tpu_custom_call.1} parent=31 // pred_check
          %p201 = pneg %p44
        $region34: #{tpu_custom_call.1} parent=31 // pred_check_branch
          %203 = sbr.rel (%p201) target = $region36
        $region35: #{tpu_custom_call.1} parent=31 // pred_region
          %s204 = sld [smem:[#allocation4 + %s22]]
          %p205 = scmp.lt.s32.totalorder %s204, 15
          %s206 = scalar_select %p205, %s204, 15
          %s207 = scalar_lea.vmem %s1, %s206
          %s208 = sld [smem:[#allocation4 + %s22]]
        $region36: #{tpu_custom_call.1} parent=31 // pred_fallthru
          _
      $region32: #{tpu_custom_call.1} parent=5 // pred_fallthru
        _
      %p209 = scmp.le.s32.totalorder 1, %s22
      %p210 = scmp.lt.s32.totalorder %s22, 9
      %p211 = pnand %p209, %p210
      %p212 = pneg %p211
      // Predicated region
      $region37: #{tpu_custom_call.1} parent=5 // pred_check
        _
      $region38: #{tpu_custom_call.1} parent=5 // pred_check_branch
        %214 = sbr.rel (%p211) target = $region40
      $region39: #{tpu_custom_call.1} parent=5 // pred_region
        %s215 = ssub.s32 %s22, 1
        // Predicated region
        $region41: #{tpu_custom_call.1} parent=39 // pred_check
          %p216 = pneg %p92
        $region42: #{tpu_custom_call.1} parent=39 // pred_check_branch
          %218 = sbr.rel (%p216) target = $region44
        $region43: #{tpu_custom_call.1} parent=39 // pred_region
          %219 = dma.done [#allocation6], 6144
        $region44: #{tpu_custom_call.1} parent=39 // pred_fallthru
          _
        %s220 = sld [smem:[#allocation4 + %s27]]
        %p221 = scmp.lt.s32.totalorder %s220, 15
        %s222 = scalar_select %p221, %s220, 15
        %s223 = scalar_lea.vmem %s1, %s222
        %p224 = pneg %p50
        %p225 = pneg %p47
        %p226 = pneg %p71
        %p227 = pneg %p68
        %p228 = pneg %p92
        %p229 = pneg %p89
        %p230 = pneg %p113
        %p231 = pneg %p110
        %p232 = pneg %p134
        %p233 = pneg %p131
        %p234 = pneg %p160
        %p235 = pneg %p157
        %s236 = sand.u32 %s147, 1
        %s237 = scalar_lea.sflag [#allocation7], %s236
        %s238 = sand.u32 %s147, 1
        %s239 = scalar_lea.vmem [#allocation8], %s238
        %s240 = sld [smem:[#allocation4 + %s27]]
        %p241 = scmp.lt.s32.totalorder %s240, 15
        %s242 = scalar_select %p241, %s240, 15
        %s243 = scalar_lea.vmem %s1, %s242
        %s244 = sld [smem:[#allocation4 + %s27]]
        %p246 = scmp.eq.s32.totalorder %s27, 0
        // Predicated region
        $region45: #{tpu_custom_call.1} parent=39 // pred_check
          %p247 = pneg %p246
        $region46: #{tpu_custom_call.1} parent=39 // pred_check_branch
          %249 = sbr.rel (%p247) target = $region48
        $region47: #{tpu_custom_call.1} parent=39 // pred_region
          %v250 = vld [vmem:[%s2] sm:$0x1]
          %251 = vst [vmem:[#allocation2] sm:$0x1] %v250
        $region48: #{tpu_custom_call.1} parent=39 // pred_fallthru
          _
        %v252 = vld [vmem:[%s243] sm:$0x1]
        %v253 = vld [vmem:[#allocation2] sm:$0x1]
        %v254 = vld [vmem:[%s4] sm:$0x7]
        %v255 = vld [vmem:[%s5] sm:$0x1]
        %v256 = vpack.c.bf16 %v253, %v253
        %v258 = vshll.u32 %v256, 16
        %vm261 = vcmask 1040384
        %vm262 = vsmask.f32 256
        %vm263 = vmand %vm261, %vm262
        %v264 = vsel %vm263, %v252, %v258
        %v265 = vld [vmem:[#allocation5] sm:$0xff]
        %v266 = vld [vmem:[#allocation5 + $0x8] sm:$0xff]
        %v267 = vld [vmem:[#allocation5 + $0x10] sm:$0xff]
        %v268 = vld [vmem:[#allocation5 + $0x18] sm:$0xff]
        %v269 = vld [vmem:[#allocation5 + $0x20] sm:$0xff]
        %v270 = vld [vmem:[#allocation5 + $0x28] sm:$0xff]
        %v271 = vld [vmem:[#allocation5 + $0x30] sm:$0xff]
        %v272 = vld [vmem:[#allocation5 + $0x38] sm:$0xff]
        %v273 = vld [vmem:[#allocation5 + $0x40] sm:$0xff]
        %v274 = vld [vmem:[#allocation5 + $0x48] sm:$0xff]
        %v275 = vld [vmem:[#allocation5 + $0x50] sm:$0xff]
        %v276 = vld [vmem:[#allocation5 + $0x58] sm:$0xff]
        %v277 = vld [vmem:[#allocation5 + $0x60] sm:$0xff]
        %v278 = vld [vmem:[#allocation5 + $0x68] sm:$0xff]
        %v279 = vld [vmem:[#allocation5 + $0x70] sm:$0xff]
        %v280 = vld [vmem:[#allocation5 + $0x78] sm:$0xff]
        %v281 = vld [vmem:[#allocation5 + $0x80] sm:$0xff]
        %v282 = vld [vmem:[#allocation5 + $0x88] sm:$0xff]
        %v283 = vld [vmem:[#allocation5 + $0x90] sm:$0xff]
        %v284 = vld [vmem:[#allocation5 + $0x98] sm:$0xff]
        %v285 = vld [vmem:[#allocation5 + $0xa0] sm:$0xff]
        %v286 = vld [vmem:[#allocation5 + $0xa8] sm:$0xff]
        %v287 = vld [vmem:[#allocation5 + $0xb0] sm:$0xff]
        %v288 = vld [vmem:[#allocation5 + $0xb8] sm:$0xff]
        %v289 = vld [vmem:[#allocation5 + $0xc0] sm:$0xff]
        %v290 = vld [vmem:[#allocation5 + $0xc8] sm:$0xff]
        %v291 = vld [vmem:[#allocation5 + $0xd0] sm:$0xff]
        %v292 = vld [vmem:[#allocation5 + $0xd8] sm:$0xff]
        %v293 = vld [vmem:[#allocation5 + $0xe0] sm:$0xff]
        %v294 = vld [vmem:[#allocation5 + $0xe8] sm:$0xff]
        %v295 = vld [vmem:[#allocation5 + $0xf0] sm:$0xff]
        %v296 = vld [vmem:[#allocation5 + $0xf8] sm:$0xff]
        %v297 = vld [vmem:[#allocation5 + $0x100] sm:$0xff]
        %v298 = vld [vmem:[#allocation5 + $0x108] sm:$0xff]
        %v299 = vld [vmem:[#allocation5 + $0x110] sm:$0xff]
        %v300 = vld [vmem:[#allocation5 + $0x118] sm:$0xff]
        %v301 = vld [vmem:[#allocation5 + $0x120] sm:$0xff]
        %v302 = vld [vmem:[#allocation5 + $0x128] sm:$0xff]
        %v303 = vld [vmem:[#allocation5 + $0x130] sm:$0xff]
        %v304 = vld [vmem:[#allocation5 + $0x138] sm:$0xff]
        %v305 = vld [vmem:[#allocation5 + $0x140] sm:$0xff]
        %v306 = vld [vmem:[#allocation5 + $0x148] sm:$0xff]
        %v307 = vld [vmem:[#allocation5 + $0x150] sm:$0xff]
        %v308 = vld [vmem:[#allocation5 + $0x158] sm:$0xff]
        %v309 = vld [vmem:[#allocation5 + $0x160] sm:$0xff]
        %v310 = vld [vmem:[#allocation5 + $0x168] sm:$0xff]
        %v311 = vld [vmem:[#allocation5 + $0x170] sm:$0xff]
        %v312 = vld [vmem:[#allocation5 + $0x178] sm:$0xff]
        %v361 = vunpack.c.l.b16 %v265
        %v362 = vunpack.c.h.b16 %v265
        %v363 = vunpack.c.l.b16 %v266
        %v364 = vunpack.c.h.b16 %v266
        %v365 = vunpack.c.l.b16 %v267
        %v366 = vunpack.c.h.b16 %v267
        %v367 = vunpack.c.l.b16 %v268
        %v368 = vunpack.c.h.b16 %v268
        %v369 = vunpack.c.l.b16 %v269
        %v370 = vunpack.c.h.b16 %v269
        %v371 = vunpack.c.l.b16 %v270
        %v372 = vunpack.c.h.b16 %v270
        %v373 = vunpack.c.l.b16 %v271
        %v374 = vunpack.c.h.b16 %v271
        %v375 = vunpack.c.l.b16 %v272
        %v376 = vunpack.c.h.b16 %v272
        %v377 = vunpack.c.l.b16 %v273
        %v378 = vunpack.c.h.b16 %v273
        %v379 = vunpack.c.l.b16 %v274
        %v380 = vunpack.c.h.b16 %v274
        %v381 = vunpack.c.l.b16 %v275
        %v382 = vunpack.c.h.b16 %v275
        %v383 = vunpack.c.l.b16 %v276
        %v384 = vunpack.c.h.b16 %v276
        %v385 = vunpack.c.l.b16 %v277
        %v386 = vunpack.c.h.b16 %v277
        %v387 = vunpack.c.l.b16 %v278
        %v388 = vunpack.c.h.b16 %v278
        %v389 = vunpack.c.l.b16 %v279
        %v390 = vunpack.c.h.b16 %v279
        %v391 = vunpack.c.l.b16 %v280
        %v392 = vunpack.c.h.b16 %v280
        %v393 = vunpack.c.l.b16 %v281
        %v394 = vunpack.c.h.b16 %v281
        %v395 = vunpack.c.l.b16 %v282
        %v396 = vunpack.c.h.b16 %v282
        %v397 = vunpack.c.l.b16 %v283
        %v398 = vunpack.c.h.b16 %v283
        %v399 = vunpack.c.l.b16 %v284
        %v400 = vunpack.c.h.b16 %v284
        %v401 = vunpack.c.l.b16 %v285
        %v402 = vunpack.c.h.b16 %v285
        %v403 = vunpack.c.l.b16 %v286
        %v404 = vunpack.c.h.b16 %v286
        %v405 = vunpack.c.l.b16 %v287
        %v406 = vunpack.c.h.b16 %v287
        %v407 = vunpack.c.l.b16 %v288
        %v408 = vunpack.c.h.b16 %v288
        %v409 = vunpack.c.l.b16 %v289
        %v410 = vunpack.c.h.b16 %v289
        %v411 = vunpack.c.l.b16 %v290
        %v412 = vunpack.c.h.b16 %v290
        %v413 = vunpack.c.l.b16 %v291
        %v414 = vunpack.c.h.b16 %v291
        %v415 = vunpack.c.l.b16 %v292
        %v416 = vunpack.c.h.b16 %v292
        %v417 = vunpack.c.l.b16 %v293
        %v418 = vunpack.c.h.b16 %v293
        %v419 = vunpack.c.l.b16 %v294
        %v420 = vunpack.c.h.b16 %v294
        %v421 = vunpack.c.l.b16 %v295
        %v422 = vunpack.c.h.b16 %v295
        %v423 = vunpack.c.l.b16 %v296
        %v424 = vunpack.c.h.b16 %v296
        %v425 = vunpack.c.l.b16 %v297
        %v426 = vunpack.c.h.b16 %v297
        %v427 = vunpack.c.l.b16 %v298
        %v428 = vunpack.c.h.b16 %v298
        %v429 = vunpack.c.l.b16 %v299
        %v430 = vunpack.c.h.b16 %v299
        %v431 = vunpack.c.l.b16 %v300
        %v432 = vunpack.c.h.b16 %v300
        %v433 = vunpack.c.l.b16 %v301
        %v434 = vunpack.c.h.b16 %v301
        %v435 = vunpack.c.l.b16 %v302
        %v436 = vunpack.c.h.b16 %v302
        %v437 = vunpack.c.l.b16 %v303
        %v438 = vunpack.c.h.b16 %v303
        %v439 = vunpack.c.l.b16 %v304
        %v440 = vunpack.c.h.b16 %v304
        %v441 = vunpack.c.l.b16 %v305
        %v442 = vunpack.c.h.b16 %v305
        %v443 = vunpack.c.l.b16 %v306
        %v444 = vunpack.c.h.b16 %v306
        %v445 = vunpack.c.l.b16 %v307
        %v446 = vunpack.c.h.b16 %v307
        %v447 = vunpack.c.l.b16 %v308
        %v448 = vunpack.c.h.b16 %v308
        %v449 = vunpack.c.l.b16 %v309
        %v450 = vunpack.c.h.b16 %v309
        %v451 = vunpack.c.l.b16 %v310
        %v452 = vunpack.c.h.b16 %v310
        %v453 = vunpack.c.l.b16 %v311
        %v454 = vunpack.c.h.b16 %v311
        %v455 = vunpack.c.l.b16 %v312
        %v456 = vunpack.c.h.b16 %v312
        %v457 = vpack.c.b16 %v367, %v361
        %v458 = vpack.c.b16 %v368, %v362
        %v459 = vpack.c.b16 %v369, %v363
        %v460 = vpack.c.b16 %v370, %v364
        %v461 = vpack.c.b16 %v371, %v365
        %v462 = vpack.c.b16 %v372, %v366
        %v463 = vpack.c.b16 %v379, %v373
        %v464 = vpack.c.b16 %v380, %v374
        %v465 = vpack.c.b16 %v381, %v375
        %v466 = vpack.c.b16 %v382, %v376
        %v467 = vpack.c.b16 %v383, %v377
        %v468 = vpack.c.b16 %v384, %v378
        %v469 = vpack.c.b16 %v391, %v385
        %v470 = vpack.c.b16 %v392, %v386
        %v471 = vpack.c.b16 %v393, %v387
        %v472 = vpack.c.b16 %v394, %v388
        %v473 = vpack.c.b16 %v395, %v389
        %v474 = vpack.c.b16 %v396, %v390
        %v475 = vpack.c.b16 %v403, %v397
        %v476 = vpack.c.b16 %v404, %v398
        %v477 = vpack.c.b16 %v405, %v399
        %v478 = vpack.c.b16 %v406, %v400
        %v479 = vpack.c.b16 %v407, %v401
        %v480 = vpack.c.b16 %v408, %v402
        %v481 = vpack.c.b16 %v415, %v409
        %v482 = vpack.c.b16 %v416, %v410
        %v483 = vpack.c.b16 %v417, %v411
        %v484 = vpack.c.b16 %v418, %v412
        %v485 = vpack.c.b16 %v419, %v413
        %v486 = vpack.c.b16 %v420, %v414
        %v487 = vpack.c.b16 %v427, %v421
        %v488 = vpack.c.b16 %v428, %v422
        %v489 = vpack.c.b16 %v429, %v423
        %v490 = vpack.c.b16 %v430, %v424
        %v491 = vpack.c.b16 %v431, %v425
        %v492 = vpack.c.b16 %v432, %v426
        %v493 = vpack.c.b16 %v439, %v433
        %v494 = vpack.c.b16 %v440, %v434
        %v495 = vpack.c.b16 %v441, %v435
        %v496 = vpack.c.b16 %v442, %v436
        %v497 = vpack.c.b16 %v443, %v437
        %v498 = vpack.c.b16 %v444, %v438
        %v499 = vpack.c.b16 %v451, %v445
        %v500 = vpack.c.b16 %v452, %v446
        %v501 = vpack.c.b16 %v453, %v447
        %v502 = vpack.c.b16 %v454, %v448
        %v503 = vpack.c.b16 %v455, %v449
        %v504 = vpack.c.b16 %v456, %v450
        %553 = vmatprep.subr.bf16.mxu0 %v500
        %554 = vmatpush1.bf16.msra.mxu0 %v499
        %555 = vmatprep.subr.bf16.mxu0 %v494
        %556 = vmatpush1.bf16.msra.mxu0 %v493
        %557 = vmatprep.subr.bf16.mxu0 %v488
        %558 = vmatpush1.bf16.msra.mxu0 %v487
        %559 = vmatprep.subr.bf16.mxu0 %v482
        %560 = vmatpush1.bf16.msra.mxu0 %v481
        %561 = vmatprep.subr.bf16.mxu0 %v476
        %562 = vmatpush1.bf16.msra.mxu0 %v475
        %563 = vmatprep.subr.bf16.mxu0 %v470
        %564 = vmatpush1.bf16.msra.mxu0 %v469
        %565 = vmatprep.subr.bf16.mxu0 %v464
        %566 = vmatpush1.bf16.msra.mxu0 %v463
        %567 = vmatprep.subr.bf16.mxu0 %v458
        %568 = vmatpush1.bf16.msra.mxu0 %v457
        %569 = vmatprep.subr.bf16.mxu0 0
        %570 = vmatpush2.bf16.msra.mxu0 0
        %571 = vmatprep.subr.bf16.mxu0 0
        %572 = vmatpush2.bf16.msra.mxu0 0
        %573 = vmatprep.subr.bf16.mxu0 0
        %574 = vmatpush2.bf16.msra.mxu0 0
        %575 = vmatprep.subr.bf16.mxu0 0
        %576 = vmatpush2.bf16.msra.mxu0 0
        %577 = vmatprep.subr.bf16.mxu0 0
        %578 = vmatpush2.bf16.msra.mxu0 0
        %579 = vmatprep.subr.bf16.mxu0 0
        %580 = vmatpush2.bf16.msra.mxu0 0
        %581 = vmatprep.subr.bf16.mxu0 0
        %582 = vmatpush2.bf16.msra.mxu0 0
        %583 = vmatprep.subr.bf16.mxu0 0
        %584 = vmatpush2.bf16.msra.mxu0 0
        %585 = vmatprep.mubr.bf16.mxu0 0
        %586 = vmatmul.mubr.bf16.gmra.mxu0 %v264
        %v587 = vpop.f32.mrf.mxu0
        %v588 = vadd.f32 0.0, %v587
        %v589 = vpop.f32.mrf.mxu0
        %v590 = vadd.f32 0.0, %v589
        %v591 = vpop.f32.mrf.mxu0
        %v592 = vpop.f32.mrf.mxu0
        %593 = vdwg.mxu0
        %594 = vmatprep.subr.bf16.mxu0 %v502
        %595 = vmatpush1.bf16.msra.mxu0 %v501
        %596 = vmatprep.subr.bf16.mxu0 %v496
        %597 = vmatpush1.bf16.msra.mxu0 %v495
        %598 = vmatprep.subr.bf16.mxu0 %v490
        %599 = vmatpush1.bf16.msra.mxu0 %v489
        %600 = vmatprep.subr.bf16.mxu0 %v484
        %601 = vmatpush1.bf16.msra.mxu0 %v483
        %602 = vmatprep.subr.bf16.mxu0 %v478
        %603 = vmatpush1.bf16.msra.mxu0 %v477
        %604 = vmatprep.subr.bf16.mxu0 %v472
        %605 = vmatpush1.bf16.msra.mxu0 %v471
        %606 = vmatprep.subr.bf16.mxu0 %v466
        %607 = vmatpush1.bf16.msra.mxu0 %v465
        %608 = vmatprep.subr.bf16.mxu0 %v460
        %609 = vmatpush1.bf16.msra.mxu0 %v459
        %610 = vmatprep.subr.bf16.mxu0 0
        %611 = vmatpush2.bf16.msra.mxu0 0
        %612 = vmatprep.subr.bf16.mxu0 0
        %613 = vmatpush2.bf16.msra.mxu0 0
        %614 = vmatprep.subr.bf16.mxu0 0
        %615 = vmatpush2.bf16.msra.mxu0 0
        %616 = vmatprep.subr.bf16.mxu0 0
        %617 = vmatpush2.bf16.msra.mxu0 0
        %618 = vmatprep.subr.bf16.mxu0 0
        %619 = vmatpush2.bf16.msra.mxu0 0
        %620 = vmatprep.subr.bf16.mxu0 0
        %621 = vmatpush2.bf16.msra.mxu0 0
        %622 = vmatprep.subr.bf16.mxu0 0
        %623 = vmatpush2.bf16.msra.mxu0 0
        %624 = vmatprep.subr.bf16.mxu0 0
        %625 = vmatpush2.bf16.msra.mxu0 0
        %626 = vmatprep.mubr.bf16.mxu0 0
        %627 = vmatmul.mubr.bf16.gmra.mxu0 %v264
        %v628 = vpop.f32.mrf.mxu0
        %v629 = vadd.f32 0.0, %v628
        %v630 = vpop.f32.mrf.mxu0
        %v631 = vadd.f32 0.0, %v630
        %v632 = vpop.f32.mrf.mxu0
        %v633 = vpop.f32.mrf.mxu0
        %634 = vdwg.mxu0
        %635 = vmatprep.subr.bf16.mxu0 %v504
        %636 = vmatpush1.bf16.msra.mxu0 %v503
        %637 = vmatprep.subr.bf16.mxu0 %v498
        %638 = vmatpush1.bf16.msra.mxu0 %v497
        %639 = vmatprep.subr.bf16.mxu0 %v492
        %640 = vmatpush1.bf16.msra.mxu0 %v491
        %641 = vmatprep.subr.bf16.mxu0 %v486
        %642 = vmatpush1.bf16.msra.mxu0 %v485
        %643 = vmatprep.subr.bf16.mxu0 %v480
        %644 = vmatpush1.bf16.msra.mxu0 %v479
        %645 = vmatprep.subr.bf16.mxu0 %v474
        %646 = vmatpush1.bf16.msra.mxu0 %v473
        %647 = vmatprep.subr.bf16.mxu0 %v468
        %648 = vmatpush1.bf16.msra.mxu0 %v467
        %649 = vmatprep.subr.bf16.mxu0 %v462
        %650 = vmatpush1.bf16.msra.mxu0 %v461
        %651 = vmatprep.subr.bf16.mxu0 0
        %652 = vmatpush2.bf16.msra.mxu0 0
        %653 = vmatprep.subr.bf16.mxu0 0
        %654 = vmatpush2.bf16.msra.mxu0 0
        %655 = vmatprep.subr.bf16.mxu0 0
        %656 = vmatpush2.bf16.msra.mxu0 0
        %657 = vmatprep.subr.bf16.mxu0 0
        %658 = vmatpush2.bf16.msra.mxu0 0
        %659 = vmatprep.subr.bf16.mxu0 0
        %660 = vmatpush2.bf16.msra.mxu0 0
        %661 = vmatprep.subr.bf16.mxu0 0
        %662 = vmatpush2.bf16.msra.mxu0 0
        %663 = vmatprep.subr.bf16.mxu0 0
        %664 = vmatpush2.bf16.msra.mxu0 0
        %665 = vmatprep.subr.bf16.mxu0 0
        %666 = vmatpush2.bf16.msra.mxu0 0
        %667 = vmatprep.mubr.bf16.mxu0 0
        %668 = vmatmul.mubr.bf16.gmra.mxu0 %v264
        %v669 = vpop.f32.mrf.mxu0
        %v670 = vadd.f32 0.0, %v669
        %v671 = vpop.f32.mrf.mxu0
        %v672 = vadd.f32 0.0, %v671
        %v673 = vpop.f32.mrf.mxu0
        %v674 = vpop.f32.mrf.mxu0
        %675 = vdwg.mxu0
        %v677 = vlaneseq
        %v678 = vshrl.u32 %v677, 7
        %v679 = vsub.s32 0, %v678
        %v680 = vrot.slane %v254, %v679
        %v681 = vlaneseq
        %v682 = vshrl.u32 %v681, 7
        %v683 = vsub.s32 1, %v682
        %v684 = vrot.slane %v254, %v683
        %v685 = vlaneseq
        %v686 = vshrl.u32 %v685, 7
        %v687 = vsub.s32 2, %v686
        %v688 = vrot.slane %v254, %v687
        %v692 = vadd.f32 %v588, %v680
        %v693 = vadd.f32 %v590, %v684
        %v694 = vadd.f32 %v629, %v688
        %v696 = vrot.slane %v631, 1
        %v698 = vadd.f32 %v692, %v696
        %v699 = vxor.u32 %v698, 2147483648
        %v700 = vmul.f32 %v699, 1.442695
        %v701 = vpow.pop %v700
        %v702 = vadd.f32 %v701, 1.0
        %v703 = vrcp.pop %v702
        %v704 = vmul.f32 1.0, %v703
        %v706 = vrot.slane %v670, 1
        %v708 = vadd.f32 %v693, %v706
        %v709 = vxor.u32 %v708, 2147483648
        %v710 = vmul.f32 %v709, 1.442695
        %v711 = vpow.pop %v710
        %v712 = vadd.f32 %v711, 1.0
        %v713 = vrcp.pop %v712
        %v714 = vmul.f32 1.0, %v713
        %v716 = vlaneseq
        %v717 = vshrl.u32 %v716, 7
        %v718 = vsub.s32 0, %v717
        %v719 = vrot.slane %v255, %v718
        %v721 = vadd.f32 %v672, %v719
        %v723 = vrot.slane %v721, 1
        %v725 = vmul.f32 %v704, %v723
        %v726 = vadd.f32 %v694, %v725
        %v727 = vtanh.pop %v726
        %v728 = vsub.f32 1.0, %v714
        %v729 = vmul.f32 %v728, %v727
        %v730 = vmul.f32 %v714, %v253
        %v731 = vadd.f32 %v729, %v730
        %732 = vst [vmem:[#allocation2] sm:$0x1] %v731
        %733 = vst [vmem:[%s239] sm:$0x1] %v731
        %s734 = sand.u32 %s147, 1
        %s735 = scalar_lea.sflag [#allocation7], %s734
        %s736 = sand.u32 %s147, 1
        %s737 = scalar_lea.vmem [#allocation8], %s736
        // Predicated region
        $region49: #{tpu_custom_call.1} parent=39 // pred_check
          %p738 = pneg %p157
        $region50: #{tpu_custom_call.1} parent=39 // pred_check_branch
          %740 = sbr.rel (%p738) target = $region52
        $region51: #{tpu_custom_call.1} parent=39 // pred_region
          %s742 = ssub.s32 16, 16
          %743 = vsyncadd %s735, %s742
          %s744 = smul.addr %s27, 16
          %s745 = scalar_lea.hbm %s6, %s744
          %s747 = sshll.u32 %s737, 4
          %s748 = int_to_ptr.vmem [resolvable:$true] %s747
          %750 = dma.vmem_to_hbm [thread:$0]  %s748, 16, %s745, %s735
        $region52: #{tpu_custom_call.1} parent=39 // pred_fallthru
          _
      $region40: #{tpu_custom_call.1} parent=5 // pred_fallthru
        _
      %p751 = scmp.le.s32.totalorder 2, %s22
      // Predicated region
      $region53: #{tpu_custom_call.1} parent=5 // pred_check
        %p752 = pneg %p751
      $region54: #{tpu_custom_call.1} parent=5 // pred_check_branch
        %754 = sbr.rel (%p752) target = $region56
      $region55: #{tpu_custom_call.1} parent=5 // pred_region
        %s755 = ssub.s32 %s22, 2
        // Predicated region
        $region57: #{tpu_custom_call.1} parent=55 // pred_check
          %p756 = pneg %p163
        $region58: #{tpu_custom_call.1} parent=55 // pred_check_branch
          %758 = sbr.rel (%p756) target = $region60
        $region59: #{tpu_custom_call.1} parent=55 // pred_region
          %s759 = sand.u32 %s148, 1
          %s760 = scalar_lea.sflag [#allocation7], %s759
          %s761 = sand.u32 %s148, 1
          %s762 = scalar_lea.vmem [#allocation8], %s761
          %763 = dma.done %s760, 16
        $region60: #{tpu_custom_call.1} parent=55 // pred_fallthru
          _
      $region56: #{tpu_custom_call.1} parent=5 // pred_fallthru
        _
    $region6: #{tpu_custom_call.1} parent=1 // loop_footer
      %s26 = sadd.s32 1, %s22
    $region7: #{tpu_custom_call.1} parent=1 // loop_footer_branch
      %21 = sbr.rel target = $region3
    $region8: #{tpu_custom_call.1} parent=1 // loop_exit
      _
    %764 = vsyncpa [#allocation6], 1
    %s765 = scalar_lea.sflag [#allocation6], 1
    %766 = vsyncpa %s765, 1
    %767 = vsyncpa [#allocation7], 1
    %s768 = scalar_lea.sflag [#allocation7], 1
    %769 = vsyncpa %s768, 1

</llo_original>
